<compile_context>
chip_gen: v7x
topology: tpu7x:2x2x1
jax: 0.10.0
libtpu: 0.0.40
codegen_flags: <defaults>
</compile_context>

<pallas_src>
import jax
import jax.numpy as jnp
from jax import lax
from jax.experimental import pallas as pl
from jax.experimental.pallas import tpu as pltpu

N_QUBITS = 16
LANES = 128
SAMPLES_PER_ROW = LANES // N_QUBITS   # 8 samples per 128-lane row
MAX_TILE_ROWS = 1024                  # 1024*128*4B = 512 KiB per buffer


def _quantum_kernel(x_ref, pmul_ref, padd_ref, o_ref):
    """Analytic PauliZ expectations, lane-dense, output already in qubit order.

    x_ref:    (T, 128) inputs in qubit order, 8 samples per row.
    pmul_ref: (1, 128)  cos(p_even) on even lanes, 1.0 on odd lanes.
    padd_ref: (1, 128)  0.0 on even lanes, p_odd on odd lanes.
    o_ref:    (T, 128)  <Z_q> per lane, qubit order.
    """
    x = x_ref[...]
    pmul = pmul_ref[...]
    padd = padd_ref[...]

    # even lane: cos(pi*x_even) ; odd lane: cos(pi*x_odd + p_odd)
    c = jnp.cos(x * jnp.float32(jnp.pi) + padd)
    # even lane: <Z_even> = cos(pi*x_even)*cos(p_even) ; odd lane: cos(pi*x_odd + p_odd)
    t = c * pmul

    # Partner broadcast via XLU lane rotate: rolled[:, l] = t[:, l-1], so every
    # odd lane sees its pair's even-lane value.  Wrap-around only lands on even
    # lanes, which ignore it below.
    rolled = pltpu.roll(t, shift=1, axis=1)

    # (1,128) lane-parity selector (1.0 on odd lanes), broadcast over rows.
    lane = lax.broadcasted_iota(jnp.int32, (1, LANES), 1)
    sel = ((lane & 1) == 1).astype(jnp.float32)

    # even lane: t = <Z_even> ; odd lane: t * rolled = <Z_even>*cos(pi*x_odd+p_odd) = <Z_odd>
    o_ref[...] = t * (rolled * sel + (jnp.float32(1.0) - sel))


@jax.jit
def quantum_conv_layer(x, q_params):
    """x: (B, C, H, W) float; q_params: (16,). Returns (B, 16) <Z> values."""
    B = x.shape[0]
    # Matches the PyTorch module: only the first n_qubits flattened values of
    # each sample feed the circuit.
    flat = x.reshape(B, -1)[:, :N_QUBITS].astype(jnp.float32)     # (B, 16)

    # Lane-aligned parameter vectors (period-16 pattern tiled across 128 lanes);
    # cos(p_even) is hoisted out of the kernel.
    qp = q_params.astype(jnp.float32)
    q_even = (jnp.arange(N_QUBITS) % 2) == 0
    pmul16 = jnp.where(q_even, jnp.cos(qp), jnp.float32(1.0))
    padd16 = jnp.where(q_even, jnp.float32(0.0), qp)
    pmul = jnp.tile(pmul16, SAMPLES_PER_ROW)[None, :]             # (1, 128)
    padd = jnp.tile(padd16, SAMPLES_PER_ROW)[None, :]             # (1, 128)

    # Pack the batch into lane-dense (rows, 128) slabs; pad so the grid divides
    # evenly and rows are sublane-aligned.
    rows = -(-B // SAMPLES_PER_ROW)
    # Tile selection: blocks as large as MAX_TILE_ROWS (fewer grid steps) but
    # capped at ~half the work so v7x's two TensorCores each get >= 1 block.
    half = -(-rows // 2)
    tile = min(MAX_TILE_ROWS, max(8, -(-half // 8) * 8))
    grid_n = -(-rows // tile)
    rows_p = grid_n * tile
    B_pad = rows_p * SAMPLES_PER_ROW
    if B_pad != B:
        flat = jnp.pad(flat, ((0, B_pad - B), (0, 0)))
    x2d = flat.reshape(rows_p, LANES)   # row-major (B_pad,16) -> (rows_p,128): bitcast

    out2d = pl.pallas_call(
        _quantum_kernel,
        grid=(grid_n,),
        out_shape=jax.ShapeDtypeStruct((rows_p, LANES), jnp.float32),
        in_specs=[
            pl.BlockSpec((tile, LANES), lambda i: (i, 0)),
            pl.BlockSpec((1, LANES), lambda i: (0, 0)),
            pl.BlockSpec((1, LANES), lambda i: (0, 0)),
        ],
        out_specs=pl.BlockSpec((tile, LANES), lambda i: (i, 0)),
        compiler_params=pltpu.CompilerParams(
            dimension_semantics=("parallel",)),
    )(x2d, pmul, padd)

    # TODO(synk): if the consumer can take the packed (rows_p,128) slab (or a
    # bf16 output), return out2d directly and skip this unpack/slice — it is an
    # extra full read+write of the result on this memory-bound op.
    return out2d.reshape(B_pad, N_QUBITS)[:B]


def _reference(x, q_params):
    B = x.shape[0]
    flat = x.reshape(B, -1)[:, :N_QUBITS].astype(jnp.float32)
    pe = q_params[0::2].astype(jnp.float32)
    po = q_params[1::2].astype(jnp.float32)
    ze = jnp.cos(flat[:, 0::2] * jnp.pi) * jnp.cos(pe)
    zo = ze * jnp.cos(flat[:, 1::2] * jnp.pi + po)
    return jnp.stack([ze, zo], axis=-1).reshape(B, N_QUBITS)


if __name__ == "__main__":
    key = jax.random.PRNGKey(0)
    kx, kp, kx2 = jax.random.split(key, 3)

    # batch=2, channels=4, spatial=2x2 -> each sample flattens to exactly 16 values
    x = jax.random.normal(kx, (2, 4, 2, 2), dtype=jnp.float32)
    # deterministic stand-in for nn.Parameter(torch.randn(n_qubits))
    q_params = jax.random.normal(kp, (N_QUBITS,), dtype=jnp.float32)

    out = jax.block_until_ready(quantum_conv_layer(x, q_params))
    assert out.shape == (2, N_QUBITS) and out.dtype == jnp.float32
    assert jnp.allclose(out, _reference(x, q_params), atol=1e-5), \
        "mismatch vs analytic reference (small batch)"

    # Larger batch: exercises batch padding and the multi-block grid
    # (8192 samples -> 1024 rows -> 2 blocks of 512 rows, one per v7x core).
    x_big = jax.random.normal(kx2, (8192, 4, 2, 2), dtype=jnp.float32)
    out_big = jax.block_until_ready(quantum_conv_layer(x_big, q_params))
    assert out_big.shape == (8192, N_QUBITS)
    assert jnp.allclose(out_big, _reference(x_big, q_params), atol=1e-5), \
        "mismatch vs analytic reference (large batch)"

    print("KERNEL_OK")
</pallas_src>

<mosaic_0001>
module attributes {stable_mosaic.version = 11 : i64} {
  func.func @_quantum_kernel(%arg0: i32, %arg1: memref<8x128xf32, #tpu.memory_space<vmem>>, %arg2: memref<1x128xf32, #tpu.memory_space<vmem>>, %arg3: memref<1x128xf32, #tpu.memory_space<vmem>>, %arg4: memref<8x128xf32, #tpu.memory_space<vmem>>) attributes {dimension_semantics = [#tpu.dimension_semantics<parallel>], iteration_bounds = array<i64: 1>, scalar_prefetch = 0 : i64, scratch_operands = 0 : i64, tpu.core_type = #tpu.core_type<tc>, window_params = [{transform_indices = @transform_0, window_bounds = array<i64: 8, 128>}, {pipeline_mode = #tpu.pipeline_mode<synchronous>, transform_indices = @transform_1, window_bounds = array<i64: 1, 128>}, {pipeline_mode = #tpu.pipeline_mode<synchronous>, transform_indices = @transform_2, window_bounds = array<i64: 1, 128>}, {transform_indices = @transform_3, window_bounds = array<i64: 8, 128>}]} {
    %c0 = arith.constant 0 : index
    %c0_0 = arith.constant 0 : index
    %0 = vector.load %arg1[%c0, %c0_0] : memref<8x128xf32, #tpu.memory_space<vmem>>, vector<8x128xf32>
    %c0_1 = arith.constant 0 : index
    %c0_2 = arith.constant 0 : index
    %1 = vector.load %arg2[%c0_1, %c0_2] : memref<1x128xf32, #tpu.memory_space<vmem>>, vector<1x128xf32>
    %c0_3 = arith.constant 0 : index
    %c0_4 = arith.constant 0 : index
    %2 = vector.load %arg3[%c0_3, %c0_4] : memref<1x128xf32, #tpu.memory_space<vmem>>, vector<1x128xf32>
    %cst = arith.constant 3.14159274 : f32
    %3 = vector.broadcast %cst : f32 to vector<8x128xf32>
    %4 = arith.mulf %0, %3 : vector<8x128xf32>
    %5 = vector.broadcast %2 : vector<1x128xf32> to vector<8x128xf32>
    %6 = arith.addf %4, %5 : vector<8x128xf32>
    %7 = math.cos %6 : vector<8x128xf32>
    %8 = vector.broadcast %1 : vector<1x128xf32> to vector<8x128xf32>
    %9 = arith.mulf %7, %8 : vector<8x128xf32>
    %c1_i32 = arith.constant 1 : i32
    %10 = tpu.dynamic_rotate %9 by %c1_i32 dim 1 : vector<8x128xf32>, i32 -> vector<8x128xf32>
    %11 = tpu.iota {dimensions = array<i32: 1>} : vector<1x128xi32>
    %c1_i32_5 = arith.constant 1 : i32
    %12 = vector.broadcast %c1_i32_5 : i32 to vector<1x128xi32>
    %13 = arith.andi %11, %12 : vector<1x128xi32>
    %c1_i32_6 = arith.constant 1 : i32
    %14 = vector.broadcast %c1_i32_6 : i32 to vector<1x128xi32>
    %15 = arith.cmpi eq, %13, %14 : vector<1x128xi32>
    %16 = arith.extui %15 : vector<1x128xi1> to vector<1x128xi32>
    %17 = arith.sitofp %16 : vector<1x128xi32> to vector<1x128xf32>
    %18 = vector.broadcast %17 : vector<1x128xf32> to vector<8x128xf32>
    %19 = arith.mulf %10, %18 : vector<8x128xf32>
    %cst_7 = arith.constant 1.000000e+00 : f32
    %20 = vector.broadcast %cst_7 : f32 to vector<1x128xf32>
    %21 = arith.subf %20, %17 : vector<1x128xf32>
    %22 = vector.broadcast %21 : vector<1x128xf32> to vector<8x128xf32>
    %23 = arith.addf %19, %22 : vector<8x128xf32>
    %24 = arith.mulf %9, %23 : vector<8x128xf32>
    %c0_8 = arith.constant 0 : index
    %c0_9 = arith.constant 0 : index
    %25 = vector.load %arg4[%c0_8, %c0_9] : memref<8x128xf32, #tpu.memory_space<vmem>>, vector<8x128xf32>
    tpu.vector_store %arg4[%c0_8, %c0_9], %24 {strides = array<i32>} : memref<8x128xf32, #tpu.memory_space<vmem>>, vector<8x128xf32>,
    return
  }
  func.func @transform_0(%arg0: i32) -> (i32, i32) {
    %c0_i32 = arith.constant 0 : i32
    %c0_i32_0 = arith.constant 0 : i32
    return %arg0, %c0_i32 : i32, i32
  }
  func.func @transform_1(%arg0: i32) -> (i32, i32) {
    %c0_i32 = arith.constant 0 : i32
    %c0_i32_0 = arith.constant 0 : i32
    %c0_i32_1 = arith.constant 0 : i32
    return %c0_i32, %c0_i32_0 : i32, i32
  }
  func.func @transform_2(%arg0: i32) -> (i32, i32) {
    %c0_i32 = arith.constant 0 : i32
    %c0_i32_0 = arith.constant 0 : i32
    %c0_i32_1 = arith.constant 0 : i32
    return %c0_i32, %c0_i32_0 : i32, i32
  }
  func.func @transform_3(%arg0: i32) -> (i32, i32) {
    %c0_i32 = arith.constant 0 : i32
    %c0_i32_0 = arith.constant 0 : i32
    return %arg0, %c0_i32 : i32, i32
  }
}

</mosaic_0001>

<llo_original>
// kernel: tile.14
$region0: #{tile.14}
  %s0 = inlined_call_operand.vmem [shape: f32[8,16], index: 0, kind: input, shape index: {}]
  %s1 = inlined_call_operand.vmem [shape: f32[1,128], index: 1, kind: output, shape index: {}]
  $region1: #{tile.14} parent=0
    #allocation0 [shape = 'u8[4096]{0}', space=vmem, size = 0x1000, scoped, tag = 'scoped mem for output reshape']
    %v2 = vld [vmem:[%s0] sm:$0x1]
    %vm3 = vcmask 130048
    %4 = vst.msk [vmem:[#allocation0] sm:$0x1] %vm3, %v2
    %s5 = scalar_lea.vmem %s0, 7
    %v6 = vld [vmem:[%s5] sm:$0x1]
    %7 = vrot.lane.b32.xlu0 %v6, 112
    %v8 = vpop.permute.xlu0 %7
    %vm9 = vcmask 1048448
    %10 = vst.msk [vmem:[#allocation0] sm:$0x1] %vm9, %v8
    %s11 = scalar_lea.vmem %s0, 6
    %v12 = vld [vmem:[%s11] sm:$0x1]
    %13 = vrot.lane.b32.xlu0 %v12, 96
    %v14 = vpop.permute.xlu0 %13
    %vm15 = vcmask 917248
    %16 = vst.msk [vmem:[#allocation0] sm:$0x1] %vm15, %v14
    %s17 = scalar_lea.vmem %s0, 5
    %v18 = vld [vmem:[%s17] sm:$0x1]
    %19 = vrot.lane.b32.xlu0 %v18, 80
    %v20 = vpop.permute.xlu0 %19
    %vm21 = vcmask 786048
    %22 = vst.msk [vmem:[#allocation0] sm:$0x1] %vm21, %v20
    %s23 = scalar_lea.vmem %s0, 4
    %v24 = vld [vmem:[%s23] sm:$0x1]
    %25 = vrot.lane.b32.xlu0 %v24, 64
    %v26 = vpop.permute.xlu0 %25
    %vm27 = vcmask 654848
    %28 = vst.msk [vmem:[#allocation0] sm:$0x1] %vm27, %v26
    %s29 = scalar_lea.vmem %s0, 3
    %v30 = vld [vmem:[%s29] sm:$0x1]
    %31 = vrot.lane.b32.xlu0 %v30, 48
    %v32 = vpop.permute.xlu0 %31
    %vm33 = vcmask 523648
    %34 = vst.msk [vmem:[#allocation0] sm:$0x1] %vm33, %v32
    %s35 = scalar_lea.vmem %s0, 2
    %v36 = vld [vmem:[%s35] sm:$0x1]
    %37 = vrot.lane.b32.xlu0 %v36, 32
    %v38 = vpop.permute.xlu0 %37
    %vm39 = vcmask 392448
    %40 = vst.msk [vmem:[#allocation0] sm:$0x1] %vm39, %v38
    %s41 = scalar_lea.vmem %s0, 1
    %v42 = vld [vmem:[%s41] sm:$0x1]
    %43 = vrot.lane.b32.xlu0 %v42, 16
    %v44 = vpop.permute.xlu0 %43
    %vm45 = vcmask 261248
    %46 = vst.msk [vmem:[#allocation0] sm:$0x1] %vm45, %v44
    %s48 = sshllo.u32 0, 1
    %v50 = vld [vmem:[#allocation0] sm:%s48]
    %s51 = sshllo.u32 0, 1
    %52 = vst [vmem:[%s1] sm:%s51] %v50

// kernel: tile.13
$region0: #{tile.13}
  #allocation0 [shape = 's32[1]{0}', space=sflag, size = 0x4, scoped, tag = 'scoped memory for tile.13']
  %s0 = inlined_call_operand.vmem [shape: f32[16], index: 0, kind: input, shape index: {}]
  %s1 = inlined_call_operand.vmem [shape: f32[8,16], index: 1, kind: output, shape index: {}]
  // Predicated region
  $region2: #{tile.13} parent=0 // pred_check
    _
  $region3: #{tile.13} parent=0 // pred_check_branch
    %3 = sbr.rel (0) target = $region5
  $region4: #{tile.13} parent=0 // pred_region
    _
  $region5: #{tile.13} parent=0 // pred_fallthru
    _
  %v4 = vld [vmem:[%s0] ss:$0 sm:$0xff]
  %5 = vst [vmem:[%s1] sm:$0xff] %v4

// kernel: quantum_conv_layer.1
$region0: #{quantum_conv_layer.1}
  #allocation0 [shape = 'u32[]', space=smem, size = 0x4, offset = 0x4, fixed_abs, tag = 'smem constant byte address 0x4 - core index']
  #allocation1 [shape = 'u32[144,128]{1,0:T(1,128)}', space=vmem, size = 0x12000, scoped, tag = 'internal scratch']
  %s0 = inlined_call_operand.vmem [shape: f32[8,128], index: 0, kind: input, shape index: {}]
  %s1 = inlined_call_operand.vmem [shape: f32[1,128], index: 1, kind: input, shape index: {}]
  %s2 = inlined_call_operand.vmem [shape: f32[1,128], index: 2, kind: input, shape index: {}]
  %s3 = inlined_call_operand.vmem [shape: f32[8,128], index: 3, kind: output, shape index: {}]
  %s4 = sld [smem:[#allocation0]]
  $region22: #{quantum_conv_layer.1} parent=0
    _
  %s6 = ssub.s32 1, %s4
  %s7 = scalar_select 0, %s6, %s4
  // Predicated region
  $region2: #{quantum_conv_layer.1} parent=0 // pred_check
    _
  $region3: #{quantum_conv_layer.1} parent=0 // pred_check_branch
    %9 = sbr.rel (0) target = $region5
  $region4: #{quantum_conv_layer.1} parent=0 // pred_region
    _
  $region5: #{quantum_conv_layer.1} parent=0 // pred_fallthru
    _
  // Predicated region
  $region6: #{quantum_conv_layer.1} parent=0 // pred_check
    _
  $region7: #{quantum_conv_layer.1} parent=0 // pred_check_branch
    %11 = sbr.rel (0) target = $region9
  $region8: #{quantum_conv_layer.1} parent=0 // pred_region
    _
  $region9: #{quantum_conv_layer.1} parent=0 // pred_fallthru
    _
  // Predicated region
  $region10: #{quantum_conv_layer.1} parent=0 // pred_check
    _
  $region11: #{quantum_conv_layer.1} parent=0 // pred_check_branch
    %13 = sbr.rel (0) target = $region13
  $region12: #{quantum_conv_layer.1} parent=0 // pred_region
    _
  $region13: #{quantum_conv_layer.1} parent=0 // pred_fallthru
    _
  %v14 = vld [vmem:[%s0] sm:$0xff]
  %v15 = vld [vmem:[%s1] sm:$0x1]
  %v16 = vld [vmem:[%s2] sm:$0x1]
  %v17 = vmul.f32 %v14, 3.1415927
  %v19 = vlaneseq
  %v20 = vshrl.u32 %v19, 7
  %v21 = vsub.s32 0, %v20
  %v22 = vrot.slane %v16, %v21
  %v24 = vadd.f32 %v17, %v22
  %v25 = vand.u32 2147483647, %v24
  %vm26 = vcmp.le.f32.partialorder %v25, 0.7853982
  %vm27 = vcmp.lt.s32.totalorder %v24, 0
  %v28 = vand.u32 %v24, 2139095040
  %v29 = vshrl.u32 %v28, 23
  %v30 = vsub.s32 %v29, 127
  %v31 = vand.u32 2147483647, %v24
  %v32 = vand.u32 %v31, 8388607
  %v33 = vor.u32 %v32, 8388608
  %v34 = vsub.s32 0, %v33
  %v35 = vadd.s32 %v30, 1
  %vm36 = vcmp.gt.s32.totalorder %v35, 0
  %v37 = vsel %vm36, %v35, 0
  %v38 = vshrl.u32 %v37, 5
  %v39 = vand.u32 %v37, 31
  %v40 = vsub.s32 32, %v39
  %v41 = vshrl.u32 683565275, %v40
  %v42 = vshll.u32 683565275, %v39
  %v43 = vshrl.u32 2475754826, %v40
  %v44 = vor.u32 %v42, %v43
  %v45 = vshll.u32 2475754826, %v39
  %v46 = vshrl.u32 2131351028, %v40
  %v47 = vor.u32 %v45, %v46
  %v48 = vshll.u32 2131351028, %v39
  %v49 = vshrl.u32 2102212464, %v40
  %v50 = vor.u32 %v48, %v49
  %v51 = vshll.u32 2102212464, %v39
  %v52 = vshrl.u32 920167782, %v40
  %v53 = vor.u32 %v51, %v52
  %v54 = vshll.u32 920167782, %v39
  %v55 = vshrl.u32 1326507024, %v40
  %v56 = vor.u32 %v54, %v55
  %vm57 = vcmp.lt.s32.totalorder %v38, 1
  %vm58 = vcmp.lt.s32.totalorder %v38, 2
  %vm59 = vcmp.lt.s32.totalorder %v38, 3
  %vm60 = vcmp.lt.s32.totalorder %v38, 4
  %v61 = vsel %vm57, %v41, %v44
  %v62 = vsel %vm60, %v50, 2102212464
  %v63 = vsel %vm59, %v47, %v62
  %v64 = vsel %vm58, %v61, %v63
  %v65 = vsel %vm57, %v44, %v47
  %v66 = vsel %vm60, %v53, 920167782
  %v67 = vsel %vm59, %v50, %v66
  %v68 = vsel %vm58, %v65, %v67
  %v69 = vsel %vm57, %v47, %v50
  %v70 = vsel %vm60, %v56, 1326507024
  %v71 = vsel %vm59, %v53, %v70
  %v72 = vsel %vm58, %v69, %v71
  %v73 = vshll.u32 %v33, 8
  %v74 = vmul.u32.u64.compose %v73, %v72
  %v75 = vextract.low.u32 %v74
  %v76 = vextract.high.u32 %v74
  %v77 = vmul.u32.u64.compose %v73, %v68
  %v78 = vextract.low.u32 %v77
  %v79 = vextract.high.u32 %v77
  %v80 = vmul.u32 %v73, %v64
  %v81 = vadd.s32 %v76, %v78
  %vm82 = vc.u32 %v76, %v78
  %v83 = vadd.s32 %v79, 1
  %v84 = vsel %vm82, %v83, %v79
  %v85 = vadd.s32 %v80, %v84
  %v86 = vadd.s32 %v85, 536870912
  %v87 = vshrl.u32 %v86, 30
  %v88 = vshll.u32 %v87, 30
  %v89 = vsub.s32 %v85, %v88
  %vm90 = vcmp.lt.s32.totalorder %v89, 0
  %v91 = vsub.s32 0, %v89
  %v92 = vsel %vm90, %v91, %v89
  %v93 = vclz %v92
  %v94 = vsub.s32 %v93, 2
  %vm95 = vcmp.gt.s32.totalorder 0, %v94
  %v96 = vsel %vm95, 0, %v94
  %v97 = vsub.s32 32, %v96
  %v98 = vshll.u32 %v89, %v96
  %v99 = vshrl.u32 %v81, %v97
  %v100 = vor.u32 %v98, %v99
  %v101 = vsub.s32 4294967266, %v96
  %v102 = vadd.s32 %v101, 127
  %v103 = vshll.u32 %v102, 23
  %v104 = vor.u32 4788187, %v103
  %v105 = vand.u32 2147483647, %v104
  %v107 = vcvt.s32.f32 %v100
  %v108 = vmul.f32 %v107, %v105
  %v109 = vxor.u32 %v108, 2147483648
  %v110 = vsel %vm27, %v109, %v108
  %v111 = vsub.s32 4, %v87
  %v112 = vsel %vm27, %v111, %v87
  %v113 = vsel %vm26, %v24, %v110
  %v114 = vsel %vm26, 0, %v112
  %v115 = vcosq.f32.pop %v113
  %v116 = vsinq.f32.pop %v113
  %vm117 = vweird.f32 %v24
  %v118 = vand.u32 %v114, 3
  %vm119 = vcmp.lt.s32.totalorder %v118, 2
  %vm120 = vcmp.eq.s32.totalorder %v118, 0
  %v121 = vxor.u32 %v116, 2147483648
  %v122 = vsel %vm120, %v115, %v121
  %vm123 = vcmp.eq.s32.totalorder %v118, 2
  %v124 = vxor.u32 %v115, 2147483648
  %v125 = vsel %vm123, %v124, %v116
  %v126 = vsel %vm119, %v122, %v125
  %v127 = vsel %vm117, nan, %v126
  %v129 = vlaneseq
  %v130 = vshrl.u32 %v129, 7
  %v131 = vsub.s32 0, %v130
  %v132 = vrot.slane %v15, %v131
  %v134 = vmul.f32 %v127, %v132
  %135 = vrot.lane.b32.xlu0 %v134, 1
  %v136 = vpop.permute.xlu0 %135
  %v137 = vlaneseq
  %v138 = vand.u32 %v137, 127
  %v139 = vand.u32 %v138, 1
  %vm140 = vcmp.eq.s32.totalorder %v139, 1
  %v141 = vsel %vm140, 1, 0
  %v142 = vcvt.s32.f32 %v141
  %v143 = vmul.f32 %v136, %v142
  %v144 = vsub.f32 1.0, %v142
  %v145 = vadd.f32 %v143, %v144
  %v146 = vmul.f32 %v134, %v145
  %147 = vst [vmem:[%s3] sm:$0xff] %v146
  // Predicated region
  $region14: #{quantum_conv_layer.1} parent=0 // pred_check
    _
  $region15: #{quantum_conv_layer.1} parent=0 // pred_check_branch
    %149 = sbr.rel (0) target = $region17
  $region16: #{quantum_conv_layer.1} parent=0 // pred_region
    _
  $region17: #{quantum_conv_layer.1} parent=0 // pred_fallthru
    _
  // Predicated region
  $region18: #{quantum_conv_layer.1} parent=0 // pred_check
    _
  $region19: #{quantum_conv_layer.1} parent=0 // pred_check_branch
    %151 = sbr.rel (0) target = $region21
  $region20: #{quantum_conv_layer.1} parent=0 // pred_region
    _
  $region21: #{quantum_conv_layer.1} parent=0 // pred_fallthru
    _

</llo_original>
